<compile_context>
chip_gen: v5e
topology: v5e:2x2
jax: 0.10.0
libtpu: 0.0.40
codegen_flags: <defaults>
</compile_context>

<pallas_src>
import jax
import jax.numpy as jnp
from jax.experimental import pallas as pl
from jax.experimental.pallas import tpu as pltpu

_LANE = 128          # lane width: both branches are packed into one 128-lane slab
_TM_MAX = 512        # max im2col rows per grid step (sweep 256/512 at ResNet scale)
_NEG_INF = float("-inf")


def _round_up(x, m):
    return ((x + m - 1) // m) * m


def _pick_tm(m):
    """Largest M tile <= _TM_MAX that still gives >= 2 grid steps (so the
    pipeline double-buffer and megacore sharding are not no-ops), >= 64."""
    tm = _TM_MAX
    while tm > 64 and _round_up(m, tm) // tm < 2:
        tm //= 2
    return tm


# ----------------------------- Pallas kernels ------------------------------ #

def _gemm_bias_floor_kernel(p_ref, w_ref, b_ref, f_ref, o_ref):
    # [tm, K] @ [K, 128] on the MXU (bf16 in, f32 accumulate) + per-column
    # bias, then max(., floor): floor = 0 -> ReLU column, floor = -inf -> linear.
    acc = jnp.dot(p_ref[...], w_ref[...], preferred_element_type=jnp.float32)
    o_ref[...] = jnp.maximum(acc + b_ref[...], f_ref[...]).astype(o_ref.dtype)


def _gemm_bias_res_relu_kernel(p_ref, w_ref, b_ref, r_ref, o_ref):
    # GEMM + bias + residual add (f32) + final ReLU (fused block epilogue).
    acc = jnp.dot(p_ref[...], w_ref[...], preferred_element_type=jnp.float32)
    acc = acc + b_ref[...] + r_ref[...].astype(jnp.float32)
    o_ref[...] = jnp.maximum(acc, 0.0).astype(o_ref.dtype)


# ----------------------------- Pallas wrappers ------------------------------ #

def _pass_gemm(patches, weight, bias, floor, tm, out_dtype):
    Mp, Kp = patches.shape
    Cp = weight.shape[1]
    return pl.pallas_call(
        _gemm_bias_floor_kernel,
        out_shape=jax.ShapeDtypeStruct((Mp, Cp), out_dtype),
        grid=(Mp // tm,),
        in_specs=[
            pl.BlockSpec((tm, Kp), lambda i: (i, 0)),   # patches: stream M tiles
            pl.BlockSpec((Kp, Cp), lambda i: (0, 0)),   # weight: grid-invariant
            pl.BlockSpec((1, Cp), lambda i: (0, 0)),    # bias
            pl.BlockSpec((1, Cp), lambda i: (0, 0)),    # per-column relu floor
        ],
        out_specs=pl.BlockSpec((tm, Cp), lambda i: (i, 0)),
        compiler_params=pltpu.CompilerParams(dimension_semantics=("parallel",)),
    )(patches, weight, bias, floor)


def _pass_gemm_residual(patches, weight, bias, residual, tm, out_dtype):
    Mp, Kp = patches.shape
    Cp = weight.shape[1]
    return pl.pallas_call(
        _gemm_bias_res_relu_kernel,
        out_shape=jax.ShapeDtypeStruct((Mp, Cp), out_dtype),
        grid=(Mp // tm,),
        in_specs=[
            pl.BlockSpec((tm, Kp), lambda i: (i, 0)),   # patches: stream M tiles
            pl.BlockSpec((Kp, Cp), lambda i: (0, 0)),   # weight: grid-invariant
            pl.BlockSpec((1, Cp), lambda i: (0, 0)),    # bias
            pl.BlockSpec((tm, Cp), lambda i: (i, 0)),   # residual: pass-1 out, in place
        ],
        out_specs=pl.BlockSpec((tm, Cp), lambda i: (i, 0)),
        compiler_params=pltpu.CompilerParams(dimension_semantics=("parallel",)),
    )(patches, weight, bias, residual)


# ------------------------------ JAX glue ----------------------------------- #

def _im2col_bf16(x_nhwc, kh, kw, stride, padding, mp, kp):
    """(N,H,W,C) -> bf16 (mp, kp) im2col patches, built as one fused producer
    (tap windows -> stack -> bf16 cast -> reshape -> single zero-pad)."""
    N, H, W, C = x_nhwc.shape
    xpad = jnp.pad(x_nhwc, ((0, 0), (padding, padding), (padding, padding), (0, 0)))
    Ho = (H + 2 * padding - kh) // stride + 1
    Wo = (W + 2 * padding - kw) // stride + 1
    taps = [xpad[:, i::stride, j::stride, :][:, :Ho, :Wo, :]
            for i in range(kh) for j in range(kw)]
    patches = jnp.stack(taps, axis=3).astype(jnp.bfloat16)     # (N,Ho,Wo,taps,C)
    patches = patches.reshape(N * Ho * Wo, kh * kw * C)
    M, K = patches.shape
    patches = jnp.pad(patches, ((0, mp - M), (0, kp - K)))
    return patches, Ho, Wo


def _to_gemm_weight(w_oihw):
    """(Cout,Cin,kh,kw) torch layout -> (kh*kw*Cin, Cout) matching im2col order."""
    cout = w_oihw.shape[0]
    return jnp.transpose(w_oihw, (2, 3, 1, 0)).reshape(-1, cout).astype(jnp.float32)


def _fold_bn(conv_bias, bn, eps=1e-5):
    """Fold conv bias + eval-mode BatchNorm into per-channel (scale, bias)."""
    gamma, beta, mean, var = bn
    scale = gamma / jnp.sqrt(var + eps)
    bias = (conv_bias - mean) * scale + beta
    return scale.astype(jnp.float32), bias.astype(jnp.float32)


def special_module_forward(x_nchw, p, kernel=(3, 1), stride=(2, 1), padding=1):
    k0, k1 = kernel
    s0, s1 = stride
    x = jnp.transpose(x_nchw, (0, 2, 3, 1)).astype(jnp.float32)   # NHWC
    N, H, W, cin = x.shape
    cout = p["w1"].shape[0]
    assert 2 * cout <= _LANE, "branch packing assumes 2*cout <= 128 lanes"

    # BN folded to (scale, bias); scale folds straight into the GEMM weight.
    sc1, bi1 = _fold_bn(p["b1"], p["bn1"])
    sc2, bi2 = _fold_bn(p["b2"], p["bn2"])
    scd, bid = _fold_bn(p["bd"], p["bnd"])
    w1 = _to_gemm_weight(p["w1"]) * sc1[None, :]
    w2 = _to_gemm_weight(p["w2"]) * sc2[None, :]
    wd = _to_gemm_weight(p["wd"]) * scd[None, :]

    # Pass-1 geometry (conv1: k0 x k0, stride s0, pad `padding`).
    Ho1 = (H + 2 * padding - k0) // s0 + 1
    Wo1 = (W + 2 * padding - k0) // s0 + 1
    M1 = N * Ho1 * Wo1
    K1 = k0 * k0 * cin
    K1p = _round_up(K1, 8)           # sublane-aligned only (no 128 K-pad blowup)
    tm = _pick_tm(M1)
    Mp = _round_up(M1, tm)

    # ---- pass 1: conv1+BN1+ReLU, packed with 1x1 downsample+BNd (one GEMM) ----
    # Output layout (one 128-lane group): cols [0,cout) = conv1 (ReLU, floor 0),
    # cols [cout,2*cout) = downsample (linear, floor -inf), rest zero.
    fuse_ds = (k1 == 1) and (k0 % 2 == 1) and (padding == k0 // 2)
    p1, _, _ = _im2col_bf16(x, k0, k0, s0, padding, Mp, K1p)

    if fuse_ds:
        # The 1x1 stride-s0 downsample reads exactly the centre tap of the
        # conv1 patches -> embed its (scaled) weight at the centre-tap rows:
        # one input read, one GEMM, both branches.
        t = (k0 // 2) * k0 + (k0 // 2)                     # centre tap index
        w_comb = jnp.zeros((K1p, _LANE), jnp.float32)
        w_comb = w_comb.at[:K1, :cout].set(w1)
        w_comb = w_comb.at[t * cin:(t + 1) * cin, cout:2 * cout].set(wd)
        b_comb = jnp.zeros((1, _LANE), jnp.float32)
        b_comb = b_comb.at[0, :cout].set(bi1).at[0, cout:2 * cout].set(bid)
        f_comb = jnp.zeros((1, _LANE), jnp.float32).at[0, cout:2 * cout].set(_NEG_INF)
        out1 = _pass_gemm(p1, w_comb.astype(jnp.bfloat16), b_comb, f_comb,
                          tm, jnp.bfloat16)                # (Mp, 128) bf16
        res = out1                                         # consumed in place by pass 2
    else:
        # General fallback: separate conv1 and downsample GEMMs.
        w1c = jnp.zeros((K1p, _LANE), jnp.float32).at[:K1, :cout].set(w1)
        b1c = jnp.zeros((1, _LANE), jnp.float32).at[0, :cout].set(bi1)
        f1c = jnp.zeros((1, _LANE), jnp.float32)
        out1 = _pass_gemm(p1, w1c.astype(jnp.bfloat16), b1c, f1c, tm, jnp.bfloat16)

        Kd = k1 * k1 * cin
        Kdp = _round_up(Kd, 8)
        pd, Hod, Wod = _im2col_bf16(x, k1, k1, s0, 0, Mp, Kdp)
        assert N * Hod * Wod == M1, "branch shapes must match (as in the torch module)"
        wdc = jnp.zeros((Kdp, _LANE), jnp.float32).at[:Kd, cout:2 * cout].set(wd)
        bdc = jnp.zeros((1, _LANE), jnp.float32).at[0, cout:2 * cout].set(bid)
        fdc = jnp.zeros((1, _LANE), jnp.float32).at[0, cout:2 * cout].set(_NEG_INF)
        res = _pass_gemm(pd, wdc.astype(jnp.bfloat16), bdc, fdc, tm, jnp.bfloat16)

    # ---- pass 2: conv2+BN2, fused with residual add + final ReLU ----
    # conv2's weight/bias are placed at output columns [cout, 2*cout) so its
    # result lands directly on the downsample columns of `res`: the residual
    # buffer is read in place, no wrapper-side slicing or re-alignment.
    y1 = out1[:M1, :cout].reshape(N, Ho1, Wo1, cout)       # bf16; fuses into im2col below
    Ho2 = (Ho1 + 2 * padding - k0) // s1 + 1
    Wo2 = (Wo1 + 2 * padding - k0) // s1 + 1
    M2 = N * Ho2 * Wo2
    assert M2 == M1, "residual and main-path shapes must match (as in the torch module)"
    K2 = k0 * k0 * cout
    K2p = _round_up(K2, 8)
    p2, _, _ = _im2col_bf16(y1, k0, k0, s1, padding, Mp, K2p)

    w2c = jnp.zeros((K2p, _LANE), jnp.float32).at[:K2, cout:2 * cout].set(w2)
    b2c = jnp.zeros((1, _LANE), jnp.float32).at[0, cout:2 * cout].set(bi2)
    out2 = _pass_gemm_residual(p2, w2c.astype(jnp.bfloat16), b2c, res, tm,
                               jnp.float32)                # (Mp, 128) f32

    out = out2[:M2, cout:2 * cout].reshape(N, Ho2, Wo2, cout)
    return jnp.transpose(out, (0, 3, 1, 2))   # back to NCHW


# --------------------------- deterministic init ----------------------------- #

def init_params(key, cin, cout, kernel):
    ks = jax.random.split(key, 9)

    def w(k, shape):
        return (0.1 * jax.random.normal(k, shape)).astype(jnp.float32)

    def bn(k, c):
        k1, k2, k3, k4 = jax.random.split(k, 4)
        gamma = (1.0 + 0.1 * jax.random.normal(k1, (c,))).astype(jnp.float32)
        beta = (0.1 * jax.random.normal(k2, (c,))).astype(jnp.float32)
        mean = (0.1 * jax.random.normal(k3, (c,))).astype(jnp.float32)
        var = (1.0 + 0.1 * jnp.abs(jax.random.normal(k4, (c,)))).astype(jnp.float32)
        return (gamma, beta, mean, var)

    return {
        "w1": w(ks[0], (cout, cin, kernel[0], kernel[0])), "b1": w(ks[1], (cout,)), "bn1": bn(ks[2], cout),
        "w2": w(ks[3], (cout, cout, kernel[0], kernel[0])), "b2": w(ks[4], (cout,)), "bn2": bn(ks[5], cout),
        "wd": w(ks[6], (cout, cin, kernel[1], kernel[1])), "bd": w(ks[7], (cout,)), "bnd": bn(ks[8], cout),
    }


# ---------------------------- pure-JAX reference ---------------------------- #

def _ref_forward(x, p, kernel=(3, 1), stride=(2, 1), padding=1):
    def conv(x, w, b, s, pad):
        y = jax.lax.conv_general_dilated(
            x, w, (s, s), [(pad, pad), (pad, pad)],
            dimension_numbers=("NCHW", "OIHW", "NCHW"))
        return y + b[None, :, None, None]

    def bn(x, stats):
        g, be, m, v = stats
        return g[None, :, None, None] * (x - m[None, :, None, None]) / jnp.sqrt(
            v[None, :, None, None] + 1e-5) + be[None, :, None, None]

    y = jax.nn.relu(bn(conv(x, p["w1"], p["b1"], stride[0], padding), p["bn1"]))
    y = bn(conv(y, p["w2"], p["b2"], stride[1], padding), p["bn2"])
    d = bn(conv(x, p["wd"], p["bd"], stride[0], 0), p["bnd"])
    return jax.nn.relu(d + y)


# ---------------------------------- main ------------------------------------ #

if __name__ == "__main__":
    in_channel, out_channel = 4, 8
    kernel, stride, padding = (3, 1), (2, 1), 1   # 3x3 main path, 1x1 downsample, stride-2

    key = jax.random.PRNGKey(0)
    kx, kp = jax.random.split(key)
    x = jax.random.normal(kx, (2, in_channel, 16, 16), dtype=jnp.float32)  # NCHW
    params = init_params(kp, in_channel, out_channel, kernel)

    fwd = jax.jit(special_module_forward,
                  static_argnames=("kernel", "stride", "padding"))
    out = jax.block_until_ready(
        fwd(x, params, kernel=kernel, stride=stride, padding=padding))

    ref = _ref_forward(x, params, kernel, stride, padding)
    assert out.shape == ref.shape == (2, out_channel, 8, 8)
    # bf16 MXU inputs / bf16 inter-pass activations (f32 accumulate & residual
    # add) -> slightly looser tolerance than pure f32.
    max_err = float(jnp.max(jnp.abs(out - ref)))
    assert jnp.allclose(out, ref, atol=3e-2, rtol=3e-2), f"max abs err = {max_err}"

    print("KERNEL_OK")
</pallas_src>

<mosaic_0001>
module attributes {stable_mosaic.version = 11 : i64} {
  func.func @_gemm_bias_floor_kernel(%arg0: i32, %arg1: memref<64x40xbf16, #tpu.memory_space<vmem>>, %arg2: memref<40x128xbf16, #tpu.memory_space<vmem>>, %arg3: memref<1x128xf32, #tpu.memory_space<vmem>>, %arg4: memref<1x128xf32, #tpu.memory_space<vmem>>, %arg5: memref<64x128xbf16, #tpu.memory_space<vmem>>) attributes {dimension_semantics = [#tpu.dimension_semantics<parallel>], iteration_bounds = array<i64: 2>, scalar_prefetch = 0 : i64, scratch_operands = 0 : i64, tpu.core_type = #tpu.core_type<tc>, window_params = [{transform_indices = @transform_0, window_bounds = array<i64: 64, 40>}, {pipeline_mode = #tpu.pipeline_mode<synchronous>, transform_indices = @transform_1, window_bounds = array<i64: 40, 128>}, {pipeline_mode = #tpu.pipeline_mode<synchronous>, transform_indices = @transform_2, window_bounds = array<i64: 1, 128>}, {pipeline_mode = #tpu.pipeline_mode<synchronous>, transform_indices = @transform_3, window_bounds = array<i64: 1, 128>}, {transform_indices = @transform_4, window_bounds = array<i64: 64, 128>}]} {
    %c0 = arith.constant 0 : index
    %c0_0 = arith.constant 0 : index
    %0 = vector.load %arg1[%c0, %c0_0] : memref<64x40xbf16, #tpu.memory_space<vmem>>, vector<64x40xbf16>
    %c0_1 = arith.constant 0 : index
    %c0_2 = arith.constant 0 : index
    %1 = vector.load %arg2[%c0_1, %c0_2] : memref<40x128xbf16, #tpu.memory_space<vmem>>, vector<40x128xbf16>
    %cst = arith.constant dense<0.000000e+00> : vector<64x128xf32>
    %2 = tpu.matmul %0, %1, %cst {dimension_numbers = #tpu.dot_dimension_numbers<[1], [0], [0], [1], [0, 0, 1, 1], [], []>} : vector<64x40xbf16>, vector<40x128xbf16>, vector<64x128xf32> -> vector<64x128xf32>
    %c0_3 = arith.constant 0 : index
    %c0_4 = arith.constant 0 : index
    %3 = vector.load %arg3[%c0_3, %c0_4] : memref<1x128xf32, #tpu.memory_space<vmem>>, vector<1x128xf32>
    %4 = vector.broadcast %3 : vector<1x128xf32> to vector<64x128xf32>
    %5 = arith.addf %2, %4 : vector<64x128xf32>
    %c0_5 = arith.constant 0 : index
    %c0_6 = arith.constant 0 : index
    %6 = vector.load %arg4[%c0_5, %c0_6] : memref<1x128xf32, #tpu.memory_space<vmem>>, vector<1x128xf32>
    %7 = vector.broadcast %6 : vector<1x128xf32> to vector<64x128xf32>
    %8 = arith.maximumf %5, %7 : vector<64x128xf32>
    %9 = arith.truncf %8 : vector<64x128xf32> to vector<64x128xbf16>
    %c0_7 = arith.constant 0 : index
    %c0_8 = arith.constant 0 : index
    %10 = vector.load %arg5[%c0_7, %c0_8] : memref<64x128xbf16, #tpu.memory_space<vmem>>, vector<64x128xbf16>
    tpu.vector_store %arg5[%c0_7, %c0_8], %9 {strides = array<i32>} : memref<64x128xbf16, #tpu.memory_space<vmem>>, vector<64x128xbf16>,
    return
  }
  func.func @transform_0(%arg0: i32) -> (i32, i32) {
    %c0_i32 = arith.constant 0 : i32
    %c0_i32_0 = arith.constant 0 : i32
    return %arg0, %c0_i32 : i32, i32
  }
  func.func @transform_1(%arg0: i32) -> (i32, i32) {
    %c0_i32 = arith.constant 0 : i32
    %c0_i32_0 = arith.constant 0 : i32
    %c0_i32_1 = arith.constant 0 : i32
    return %c0_i32, %c0_i32_0 : i32, i32
  }
  func.func @transform_2(%arg0: i32) -> (i32, i32) {
    %c0_i32 = arith.constant 0 : i32
    %c0_i32_0 = arith.constant 0 : i32
    %c0_i32_1 = arith.constant 0 : i32
    return %c0_i32, %c0_i32_0 : i32, i32
  }
  func.func @transform_3(%arg0: i32) -> (i32, i32) {
    %c0_i32 = arith.constant 0 : i32
    %c0_i32_0 = arith.constant 0 : i32
    %c0_i32_1 = arith.constant 0 : i32
    return %c0_i32, %c0_i32_0 : i32, i32
  }
  func.func @transform_4(%arg0: i32) -> (i32, i32) {
    %c0_i32 = arith.constant 0 : i32
    %c0_i32_0 = arith.constant 0 : i32
    return %arg0, %c0_i32 : i32, i32
  }
}

module attributes {stable_mosaic.version = 11 : i64} {
  func.func @_gemm_bias_res_relu_kernel(%arg0: i32, %arg1: memref<64x72xbf16, #tpu.memory_space<vmem>>, %arg2: memref<72x128xbf16, #tpu.memory_space<vmem>>, %arg3: memref<1x128xf32, #tpu.memory_space<vmem>>, %arg4: memref<64x128xbf16, #tpu.memory_space<vmem>>, %arg5: memref<64x128xf32, #tpu.memory_space<vmem>>) attributes {dimension_semantics = [#tpu.dimension_semantics<parallel>], iteration_bounds = array<i64: 2>, scalar_prefetch = 0 : i64, scratch_operands = 0 : i64, tpu.core_type = #tpu.core_type<tc>, window_params = [{transform_indices = @transform_0, window_bounds = array<i64: 64, 72>}, {pipeline_mode = #tpu.pipeline_mode<synchronous>, transform_indices = @transform_1, window_bounds = array<i64: 72, 128>}, {pipeline_mode = #tpu.pipeline_mode<synchronous>, transform_indices = @transform_2, window_bounds = array<i64: 1, 128>}, {transform_indices = @transform_3, window_bounds = array<i64: 64, 128>}, {transform_indices = @transform_4, window_bounds = array<i64: 64, 128>}]} {
    %c0 = arith.constant 0 : index
    %c0_0 = arith.constant 0 : index
    %0 = vector.load %arg1[%c0, %c0_0] : memref<64x72xbf16, #tpu.memory_space<vmem>>, vector<64x72xbf16>
    %c0_1 = arith.constant 0 : index
    %c0_2 = arith.constant 0 : index
    %1 = vector.load %arg2[%c0_1, %c0_2] : memref<72x128xbf16, #tpu.memory_space<vmem>>, vector<72x128xbf16>
    %cst = arith.constant dense<0.000000e+00> : vector<64x128xf32>
    %2 = tpu.matmul %0, %1, %cst {dimension_numbers = #tpu.dot_dimension_numbers<[1], [0], [0], [1], [0, 0, 1, 1], [], []>} : vector<64x72xbf16>, vector<72x128xbf16>, vector<64x128xf32> -> vector<64x128xf32>
    %c0_3 = arith.constant 0 : index
    %c0_4 = arith.constant 0 : index
    %3 = vector.load %arg3[%c0_3, %c0_4] : memref<1x128xf32, #tpu.memory_space<vmem>>, vector<1x128xf32>
    %4 = vector.broadcast %3 : vector<1x128xf32> to vector<64x128xf32>
    %5 = arith.addf %2, %4 : vector<64x128xf32>
    %c0_5 = arith.constant 0 : index
    %c0_6 = arith.constant 0 : index
    %6 = vector.load %arg4[%c0_5, %c0_6] : memref<64x128xbf16, #tpu.memory_space<vmem>>, vector<64x128xbf16>
    %7 = arith.extf %6 : vector<64x128xbf16> to vector<64x128xf32>
    %8 = arith.addf %5, %7 : vector<64x128xf32>
    %cst_7 = arith.constant 0.000000e+00 : f32
    %9 = vector.broadcast %cst_7 : f32 to vector<64x128xf32>
    %10 = arith.maximumf %8, %9 : vector<64x128xf32>
    %c0_8 = arith.constant 0 : index
    %c0_9 = arith.constant 0 : index
    %11 = vector.load %arg5[%c0_8, %c0_9] : memref<64x128xf32, #tpu.memory_space<vmem>>, vector<64x128xf32>
    tpu.vector_store %arg5[%c0_8, %c0_9], %10 {strides = array<i32>} : memref<64x128xf32, #tpu.memory_space<vmem>>, vector<64x128xf32>,
    return
  }
  func.func @transform_0(%arg0: i32) -> (i32, i32) {
    %c0_i32 = arith.constant 0 : i32
    %c0_i32_0 = arith.constant 0 : i32
    return %arg0, %c0_i32 : i32, i32
  }
  func.func @transform_1(%arg0: i32) -> (i32, i32) {
    %c0_i32 = arith.constant 0 : i32
    %c0_i32_0 = arith.constant 0 : i32
    %c0_i32_1 = arith.constant 0 : i32
    return %c0_i32, %c0_i32_0 : i32, i32
  }
  func.func @transform_2(%arg0: i32) -> (i32, i32) {
    %c0_i32 = arith.constant 0 : i32
    %c0_i32_0 = arith.constant 0 : i32
    %c0_i32_1 = arith.constant 0 : i32
    return %c0_i32, %c0_i32_0 : i32, i32
  }
  func.func @transform_3(%arg0: i32) -> (i32, i32) {
    %c0_i32 = arith.constant 0 : i32
    %c0_i32_0 = arith.constant 0 : i32
    return %arg0, %c0_i32 : i32, i32
  }
  func.func @transform_4(%arg0: i32) -> (i32, i32) {
    %c0_i32 = arith.constant 0 : i32
    %c0_i32_0 = arith.constant 0 : i32
    return %arg0, %c0_i32 : i32, i32
  }
}

</mosaic_0001>

<llo_original>
// kernel: special_module_forward.2
$region0: #{special_module_forward.2}
  #allocation0 [shape = 'u32[]', space=smem, size = 0x4, offset = 0x4, fixed_abs, tag = 'smem constant byte address 0x4 - core index']
  #allocation1 [shape = 'u32[72,128]{1,0:T(1,128)}', space=vmem, size = 0x9000, scoped, tag = 'internal scratch']
  %s0 = inlined_call_operand.vmem [shape: bf16[128,40], index: 0, kind: input, shape index: {}]
  %s1 = inlined_call_operand.vmem [shape: bf16[40,128], index: 1, kind: input, shape index: {}]
  %s2 = inlined_call_operand.vmem [shape: f32[1,128], index: 2, kind: input, shape index: {}]
  %s3 = inlined_call_operand.vmem [shape: f32[1,128], index: 3, kind: input, shape index: {}]
  %s4 = inlined_call_operand.vmem [shape: bf16[128,128], index: 4, kind: output, shape index: {}]
  %s5 = sld [smem:[#allocation0]]
  $region49: #{special_module_forward.2} parent=0
    _
  %s7 = ssub.s32 1, %s5
  %s8 = scalar_select 0, %s7, %s5
  loop: start=0, step=1, limit=4
  $region2: #{special_module_forward.2} parent=0 // loop_pre_header
    _
  $region3: #{special_module_forward.2} parent=0 // loop_header
    %s10 = sphi 0, %s14
    %p11 = scmp.ge.s32.totalorder %s10, 4
    %s20 = sphi 0, %s22
    %s23 = sphi 0, %s20
    %s24 = sphi 0, %s23
    %s40 = sphi 0, %s24
    %s44 = sphi 0, %s44
    %s46 = sphi 0, %s44
    %s47 = sphi 0, %s46
    %s61 = sphi 0, %s47
    %s65 = sphi 0, %s65
    %s67 = sphi 0, %s65
    %s68 = sphi 0, %s67
    %s82 = sphi 0, %s68
    %s86 = sphi 0, %s86
    %s88 = sphi 0, %s86
    %s89 = sphi 0, %s88
    %s103 = sphi 0, %s89
    %s109 = sphi 0, %s111
    %s112 = sphi 0, %s109
    %s113 = sphi 0, %s112
    %s129 = sphi 0, %s113
  $region4: #{special_module_forward.2} parent=0 // loop_header_branch
    %13 = sbr.rel (%p11) target = $region8
  $region5: #{special_module_forward.2} parent=0 // loop_body
    %s15 = ssub.s32 %s10, 1
    %s16 = ssub.s32 %s10, 2
    %s17 = sadd.s32 %s10, 1
    %s18 = ssub.s32 %s10, %s17
    %p19 = scmp.eq.s32.totalorder %s18, 0
    %s21 = sadd.s32 %s20, 1
    %s22 = scalar_select %p19, %s20, %s21
    %p25 = pneg %p19
    %p26 = scmp.eq.s32.totalorder %s10, 1
    %p27 = por %p25, %p26
    %p28 = scmp.ne.s32.totalorder %s20, %s23
    %p29 = scmp.eq.s32.totalorder %s10, 0
    %p30 = por %p28, %p29
    %p31 = scmp.ne.s32.totalorder %s20, %s23
    %p32 = scmp.eq.s32.totalorder %s15, 1
    %p33 = por %p31, %p32
    %p34 = scmp.ne.s32.totalorder %s23, %s24
    %p35 = scmp.eq.s32.totalorder %s15, 0
    %p36 = por %p34, %p35
    %p37 = scmp.ne.s32.totalorder %s23, %s24
    %p38 = scmp.eq.s32.totalorder %s16, 1
    %p39 = por %p37, %p38
    %p41 = scmp.ne.s32.totalorder %s24, %s40
    %p42 = scmp.eq.s32.totalorder %s16, 0
    %p43 = por %p41, %p42
    %s45 = sadd.s32 %s44, 1
    %p48 = scmp.eq.s32.totalorder %s10, 1
    %p49 = scmp.ne.s32.totalorder %s44, %s46
    %p50 = scmp.eq.s32.totalorder %s10, 0
    %p51 = por %p49, %p50
    %p52 = scmp.ne.s32.totalorder %s44, %s46
    %p53 = scmp.eq.s32.totalorder %s15, 1
    %p54 = por %p52, %p53
    %p55 = scmp.ne.s32.totalorder %s46, %s47
    %p56 = scmp.eq.s32.totalorder %s15, 0
    %p57 = por %p55, %p56
    %p58 = scmp.ne.s32.totalorder %s46, %s47
    %p59 = scmp.eq.s32.totalorder %s16, 1
    %p60 = por %p58, %p59
    %p62 = scmp.ne.s32.totalorder %s47, %s61
    %p63 = scmp.eq.s32.totalorder %s16, 0
    %p64 = por %p62, %p63
    %s66 = sadd.s32 %s65, 1
    %p69 = scmp.eq.s32.totalorder %s10, 1
    %p70 = scmp.ne.s32.totalorder %s65, %s67
    %p71 = scmp.eq.s32.totalorder %s10, 0
    %p72 = por %p70, %p71
    %p73 = scmp.ne.s32.totalorder %s65, %s67
    %p74 = scmp.eq.s32.totalorder %s15, 1
    %p75 = por %p73, %p74
    %p76 = scmp.ne.s32.totalorder %s67, %s68
    %p77 = scmp.eq.s32.totalorder %s15, 0
    %p78 = por %p76, %p77
    %p79 = scmp.ne.s32.totalorder %s67, %s68
    %p80 = scmp.eq.s32.totalorder %s16, 1
    %p81 = por %p79, %p80
    %p83 = scmp.ne.s32.totalorder %s68, %s82
    %p84 = scmp.eq.s32.totalorder %s16, 0
    %p85 = por %p83, %p84
    %s87 = sadd.s32 %s86, 1
    %p90 = scmp.eq.s32.totalorder %s10, 1
    %p91 = scmp.ne.s32.totalorder %s86, %s88
    %p92 = scmp.eq.s32.totalorder %s10, 0
    %p93 = por %p91, %p92
    %p94 = scmp.ne.s32.totalorder %s86, %s88
    %p95 = scmp.eq.s32.totalorder %s15, 1
    %p96 = por %p94, %p95
    %p97 = scmp.ne.s32.totalorder %s88, %s89
    %p98 = scmp.eq.s32.totalorder %s15, 0
    %p99 = por %p97, %p98
    %p100 = scmp.ne.s32.totalorder %s88, %s89
    %p101 = scmp.eq.s32.totalorder %s16, 1
    %p102 = por %p100, %p101
    %p104 = scmp.ne.s32.totalorder %s89, %s103
    %p105 = scmp.eq.s32.totalorder %s16, 0
    %p106 = por %p104, %p105
    %s107 = ssub.s32 %s10, %s17
    %p108 = scmp.eq.s32.totalorder %s107, 0
    %s110 = sadd.s32 %s109, 1
    %s111 = scalar_select %p108, %s109, %s110
    %p114 = pneg %p108
    %p115 = scmp.eq.s32.totalorder %s10, 1
    %p116 = por %p114, %p115
    %p117 = scmp.ne.s32.totalorder %s109, %s112
    %p118 = scmp.eq.s32.totalorder %s10, 0
    %p119 = por %p117, %p118
    %p120 = scmp.ne.s32.totalorder %s109, %s112
    %p121 = scmp.eq.s32.totalorder %s15, 1
    %p122 = por %p120, %p121
    %p123 = scmp.ne.s32.totalorder %s112, %s113
    %p124 = scmp.eq.s32.totalorder %s15, 0
    %p125 = por %p123, %p124
    %p126 = scmp.ne.s32.totalorder %s112, %s113
    %p127 = scmp.eq.s32.totalorder %s16, 1
    %p128 = por %p126, %p127
    %p130 = scmp.ne.s32.totalorder %s113, %s129
    %p131 = scmp.eq.s32.totalorder %s16, 0
    %p132 = por %p130, %p131
    %p133 = scmp.le.s32.totalorder 1, %s10
    %p134 = scmp.lt.s32.totalorder %s10, 3
    %p135 = pnand %p133, %p134
    %p136 = pneg %p135
    // Predicated region
    $region9: #{special_module_forward.2} parent=5 // pred_check
      _
    $region10: #{special_module_forward.2} parent=5 // pred_check_branch
      %138 = sbr.rel (%p135) target = $region12
    $region11: #{special_module_forward.2} parent=5 // pred_region
      %s139 = ssub.s32 %s10, 1
      // Predicated region
      $region13: #{special_module_forward.2} parent=11 // pred_check
        %p140 = pneg %p57
      $region14: #{special_module_forward.2} parent=11 // pred_check_branch
        %142 = sbr.rel (%p140) target = $region16
      $region15: #{special_module_forward.2} parent=11 // pred_region
        _
      $region16: #{special_module_forward.2} parent=11 // pred_fallthru
        _
      // Predicated region
      $region17: #{special_module_forward.2} parent=11 // pred_check
        %p143 = pneg %p78
      $region18: #{special_module_forward.2} parent=11 // pred_check_branch
        %145 = sbr.rel (%p143) target = $region20
      $region19: #{special_module_forward.2} parent=11 // pred_region
        _
      $region20: #{special_module_forward.2} parent=11 // pred_fallthru
        _
      // Predicated region
      $region21: #{special_module_forward.2} parent=11 // pred_check
        %p146 = pneg %p99
      $region22: #{special_module_forward.2} parent=11 // pred_check_branch
        %148 = sbr.rel (%p146) target = $region24
      $region23: #{special_module_forward.2} parent=11 // pred_region
        _
      $region24: #{special_module_forward.2} parent=11 // pred_fallthru
        _
    $region12: #{special_module_forward.2} parent=5 // pred_fallthru
      _
    %p149 = scmp.lt.s32.totalorder %s10, 2
    // Predicated region
    $region25: #{special_module_forward.2} parent=5 // pred_check
      %p150 = pneg %p149
    $region26: #{special_module_forward.2} parent=5 // pred_check_branch
      %152 = sbr.rel (%p150) target = $region28
    $region27: #{special_module_forward.2} parent=5 // pred_region
      // Predicated region
      $region29: #{special_module_forward.2} parent=27 // pred_check
        %p153 = pneg %p30
      $region30: #{special_module_forward.2} parent=27 // pred_check_branch
        %155 = sbr.rel (%p153) target = $region32
      $region31: #{special_module_forward.2} parent=27 // pred_region
        %s156 = smul.u32 8, %s10
        %p157 = scmp.lt.s32.totalorder %s156, 15
        %s158 = scalar_select %p157, %s156, 15
        %s159 = smul.addr %s158, 4
        %s160 = scalar_lea.vmem %s0, %s159
        %s161 = smul.u32 8, %s10
      $region32: #{special_module_forward.2} parent=27 // pred_fallthru
        _
    $region28: #{special_module_forward.2} parent=5 // pred_fallthru
      _
    %p162 = scmp.le.s32.totalorder 1, %s10
    %p163 = scmp.lt.s32.totalorder %s10, 3
    %p164 = pnand %p162, %p163
    %p165 = pneg %p164
    // Predicated region
    $region33: #{special_module_forward.2} parent=5 // pred_check
      _
    $region34: #{special_module_forward.2} parent=5 // pred_check_branch
      %167 = sbr.rel (%p164) target = $region36
    $region35: #{special_module_forward.2} parent=5 // pred_region
      %s168 = ssub.s32 %s10, 1
      %s169 = smul.u32 8, %s15
      %p170 = scmp.lt.s32.totalorder %s169, 15
      %s171 = scalar_select %p170, %s169, 15
      %s172 = smul.addr %s171, 4
      %s173 = scalar_lea.vmem %s0, %s172
      %p174 = pneg %p36
      %p175 = pneg %p33
      %p176 = pneg %p57
      %p177 = pneg %p54
      %p178 = pneg %p78
      %p179 = pneg %p75
      %p180 = pneg %p99
      %p181 = pneg %p96
      %p182 = pneg %p125
      %p183 = pneg %p122
      %s184 = smul.u32 8, %s15
      %p185 = scmp.lt.s32.totalorder %s184, 15
      %s186 = scalar_select %p185, %s184, 15
      %s187 = smul.addr %s186, 4
      %s188 = scalar_lea.vmem %s4, %s187
      %s189 = smul.u32 8, %s15
      %p190 = scmp.lt.s32.totalorder %s189, 15
      %s191 = scalar_select %p190, %s189, 15
      %s192 = smul.addr %s191, 4
      %s193 = scalar_lea.vmem %s0, %s192
      %s194 = smul.u32 8, %s15
      %s195 = smul.u32 8, %s15
      %p196 = scmp.lt.s32.totalorder %s195, 15
      %s197 = scalar_select %p196, %s195, 15
      %s198 = smul.addr %s197, 4
      %s199 = scalar_lea.vmem %s4, %s198
      %s200 = smul.u32 8, %s15
      %v202 = vld [vmem:[%s193] sm:$0xf]
      %v203 = vld [vmem:[%s193 + $0x4] sm:$0xf]
      %v204 = vld [vmem:[%s193 + $0x8] sm:$0xf]
      %v205 = vld [vmem:[%s193 + $0xc] sm:$0xf]
      %v206 = vld [vmem:[%s193 + $0x10] sm:$0xf]
      %v207 = vld [vmem:[%s193 + $0x14] sm:$0xf]
      %v208 = vld [vmem:[%s193 + $0x18] sm:$0xf]
      %v209 = vld [vmem:[%s193 + $0x1c] sm:$0xf]
      %v210 = vld [vmem:[%s1] sm:$0xf]
      %v211 = vld [vmem:[%s1 + $0x4] sm:$0xf]
      %v212 = vld [vmem:[%s1 + $0x8] sm:$0xf]
      %v213 = vld [vmem:[%s1 + $0xc] sm:$0xf]
      %v214 = vld [vmem:[%s1 + $0x10] sm:$0xf]
      %v215 = vld [vmem:[%s2] sm:$0x1]
      %v217 = vperm.slane %v215, 0
      %v227 = vunpack.c.l.b16 %v202
      %v228 = vunpack.c.l.b16 %v203
      %v229 = vunpack.c.l.b16 %v204
      %v230 = vunpack.c.l.b16 %v205
      %v231 = vunpack.c.l.b16 %v206
      %v232 = vunpack.c.l.b16 %v207
      %v233 = vunpack.c.l.b16 %v208
      %v234 = vunpack.c.l.b16 %v209
      %v235 = vpack.c.b16 %v228, %v227
      %v236 = vpack.c.b16 %v230, %v229
      %v237 = vpack.c.b16 %v232, %v231
      %v238 = vpack.c.b16 %v234, %v233
      %v244 = vunpack.c.l.b16 %v210
      %v245 = vunpack.c.l.b16 %v211
      %v246 = vunpack.c.l.b16 %v212
      %v247 = vunpack.c.l.b16 %v213
      %v248 = vunpack.c.l.b16 %v214
      %v249 = vpack.c.b16 %v245, %v244
      %v250 = vpack.c.b16 %v247, %v246
      %v251 = vpack.c.b16 %v248, %v248
      %vm254 = vcmask 326656
      %v256 = vsel %vm254, %v235, 0
      %v259 = vsel %vm254, %v236, 0
      %v262 = vsel %vm254, %v237, 0
      %v265 = vsel %vm254, %v238, 0
      %vm267 = vcmask 1043456
      %v269 = vsel %vm267, %v251, 0
      %271 = vmatpush.bf16.msra.mxu0 0
      %272 = vmatpush.bf16.msra.mxu0 0
      %273 = vmatpush.bf16.msra.mxu0 0
      %274 = vmatpush.bf16.msra.mxu0 0
      %275 = vmatpush.bf16.msra.mxu0 0
      %276 = vmatpush.bf16.msra.mxu0 %v269
      %277 = vmatpush.bf16.msra.mxu0 %v250
      %278 = vmatpush.bf16.msra.mxu0 %v249
      %279 = vmatmul.bf16.gmra.mxu0 %v256
      %v280 = vpop.f32.mrf.mxu0
      %v281 = vadd.f32 %v217, %v280
      %v282 = vpop.f32.mrf.mxu0
      %v283 = vadd.f32 %v217, %v282
      %284 = vmatmul.bf16.gmra.mxu0 %v259
      %v285 = vpop.f32.mrf.mxu0
      %v286 = vadd.f32 %v217, %v285
      %v287 = vpop.f32.mrf.mxu0
      %v288 = vadd.f32 %v217, %v287
      %289 = vmatmul.bf16.gmra.mxu0 %v262
      %v290 = vpop.f32.mrf.mxu0
      %v291 = vadd.f32 %v217, %v290
      %v292 = vpop.f32.mrf.mxu0
      %v293 = vadd.f32 %v217, %v292
      %294 = vmatmul.bf16.gmra.mxu0 %v265
      %v295 = vpop.f32.mrf.mxu0
      %v296 = vadd.f32 %v217, %v295
      %v297 = vpop.f32.mrf.mxu0
      %v298 = vadd.f32 %v217, %v297
      %299 = vdwg.mxu0
      %v300 = vld [vmem:[%s3] sm:$0x1]
      %v302 = vperm.slane %v300, 0
      %v304 = vmax.f32 %v281, %v302
      %v305 = vmax.f32 %v283, %v302
      %v306 = vmax.f32 %v286, %v302
      %v307 = vmax.f32 %v288, %v302
      %v308 = vmax.f32 %v291, %v302
      %v309 = vmax.f32 %v293, %v302
      %v310 = vmax.f32 %v296, %v302
      %v311 = vmax.f32 %v298, %v302
      %v312 = vpack.c.bf16 %v304, %v304
      %v313 = vpack.c.bf16 %v305, %v305
      %v314 = vpack.c.bf16 %v306, %v306
      %v315 = vpack.c.bf16 %v307, %v307
      %v316 = vpack.c.bf16 %v308, %v308
      %v317 = vpack.c.bf16 %v309, %v309
      %v318 = vpack.c.bf16 %v310, %v310
      %v319 = vpack.c.bf16 %v311, %v311
      %320 = vst [vmem:[%s199] sm:$0xf] %v312
      %321 = vst [vmem:[%s199 + $0x4] sm:$0xf] %v313
      %322 = vst [vmem:[%s199 + $0x8] sm:$0xf] %v314
      %323 = vst [vmem:[%s199 + $0xc] sm:$0xf] %v315
      %324 = vst [vmem:[%s199 + $0x10] sm:$0xf] %v316
      %325 = vst [vmem:[%s199 + $0x14] sm:$0xf] %v317
      %326 = vst [vmem:[%s199 + $0x18] sm:$0xf] %v318
      %327 = vst [vmem:[%s199 + $0x1c] sm:$0xf] %v319
      %s328 = smul.u32 8, %s15
      %p329 = scmp.lt.s32.totalorder %s328, 15
      %s330 = scalar_select %p329, %s328, 15
      %s331 = smul.addr %s330, 4
      %s332 = scalar_lea.vmem %s4, %s331
      // Predicated region
      $region37: #{special_module_forward.2} parent=35 // pred_check
        %p333 = pneg %p122
      $region38: #{special_module_forward.2} parent=35 // pred_check_branch
        %335 = sbr.rel (%p333) target = $region40
      $region39: #{special_module_forward.2} parent=35 // pred_region
        %s336 = smul.u32 8, %s15
      $region40: #{special_module_forward.2} parent=35 // pred_fallthru
        _
    $region36: #{special_module_forward.2} parent=5 // pred_fallthru
      _
    %p337 = scmp.le.s32.totalorder 2, %s10
    // Predicated region
    $region41: #{special_module_forward.2} parent=5 // pred_check
      %p338 = pneg %p337
    $region42: #{special_module_forward.2} parent=5 // pred_check_branch
      %340 = sbr.rel (%p338) target = $region44
    $region43: #{special_module_forward.2} parent=5 // pred_region
      %s341 = ssub.s32 %s10, 2
      // Predicated region
      $region45: #{special_module_forward.2} parent=43 // pred_check
        %p342 = pneg %p128
      $region46: #{special_module_forward.2} parent=43 // pred_check_branch
        %344 = sbr.rel (%p342) target = $region48
      $region47: #{special_module_forward.2} parent=43 // pred_region
        %s345 = smul.u32 8, %s16
        %p346 = scmp.lt.s32.totalorder %s345, 15
        %s347 = scalar_select %p346, %s345, 15
        %s348 = smul.addr %s347, 4
        %s349 = scalar_lea.vmem %s4, %s348
      $region48: #{special_module_forward.2} parent=43 // pred_fallthru
        _
    $region44: #{special_module_forward.2} parent=5 // pred_fallthru
      _
  $region6: #{special_module_forward.2} parent=0 // loop_footer
    %s14 = sadd.s32 1, %s10
  $region7: #{special_module_forward.2} parent=0 // loop_footer_branch
    %9 = sbr.rel target = $region3
  $region8: #{special_module_forward.2} parent=0 // loop_exit
    _

// kernel: special_module_forward.3
$region0: #{special_module_forward.3}
  #allocation0 [shape = 'u32[]', space=smem, size = 0x4, offset = 0x4, fixed_abs, tag = 'smem constant byte address 0x4 - core index']
  #allocation1 [shape = 'u32[72,128]{1,0:T(1,128)}', space=vmem, size = 0x9000, scoped, tag = 'internal scratch']
  %s0 = inlined_call_operand.vmem [shape: bf16[128,72], index: 0, kind: input, shape index: {}]
  %s1 = inlined_call_operand.vmem [shape: bf16[72,128], index: 1, kind: input, shape index: {}]
  %s2 = inlined_call_operand.vmem [shape: f32[1,128], index: 2, kind: input, shape index: {}]
  %s3 = inlined_call_operand.vmem [shape: bf16[128,128], index: 3, kind: input, shape index: {}]
  %s4 = inlined_call_operand.vmem [shape: f32[128,128], index: 4, kind: output, shape index: {}]
  %s5 = sld [smem:[#allocation0]]
  $region49: #{special_module_forward.3} parent=0
    _
  %s7 = ssub.s32 1, %s5
  %s8 = scalar_select 0, %s7, %s5
  loop: start=0, step=1, limit=4
  $region2: #{special_module_forward.3} parent=0 // loop_pre_header
    _
  $region3: #{special_module_forward.3} parent=0 // loop_header
    %s10 = sphi 0, %s14
    %p11 = scmp.ge.s32.totalorder %s10, 4
    %s20 = sphi 0, %s22
    %s23 = sphi 0, %s20
    %s24 = sphi 0, %s23
    %s40 = sphi 0, %s24
    %s44 = sphi 0, %s44
    %s46 = sphi 0, %s44
    %s47 = sphi 0, %s46
    %s61 = sphi 0, %s47
    %s65 = sphi 0, %s65
    %s67 = sphi 0, %s65
    %s68 = sphi 0, %s67
    %s82 = sphi 0, %s68
    %s88 = sphi 0, %s90
    %s91 = sphi 0, %s88
    %s92 = sphi 0, %s91
    %s108 = sphi 0, %s92
    %s114 = sphi 0, %s116
    %s117 = sphi 0, %s114
    %s118 = sphi 0, %s117
    %s134 = sphi 0, %s118
  $region4: #{special_module_forward.3} parent=0 // loop_header_branch
    %13 = sbr.rel (%p11) target = $region8
  $region5: #{special_module_forward.3} parent=0 // loop_body
    %s15 = ssub.s32 %s10, 1
    %s16 = ssub.s32 %s10, 2
    %s17 = sadd.s32 %s10, 1
    %s18 = ssub.s32 %s10, %s17
    %p19 = scmp.eq.s32.totalorder %s18, 0
    %s21 = sadd.s32 %s20, 1
    %s22 = scalar_select %p19, %s20, %s21
    %p25 = pneg %p19
    %p26 = scmp.eq.s32.totalorder %s10, 1
    %p27 = por %p25, %p26
    %p28 = scmp.ne.s32.totalorder %s20, %s23
    %p29 = scmp.eq.s32.totalorder %s10, 0
    %p30 = por %p28, %p29
    %p31 = scmp.ne.s32.totalorder %s20, %s23
    %p32 = scmp.eq.s32.totalorder %s15, 1
    %p33 = por %p31, %p32
    %p34 = scmp.ne.s32.totalorder %s23, %s24
    %p35 = scmp.eq.s32.totalorder %s15, 0
    %p36 = por %p34, %p35
    %p37 = scmp.ne.s32.totalorder %s23, %s24
    %p38 = scmp.eq.s32.totalorder %s16, 1
    %p39 = por %p37, %p38
    %p41 = scmp.ne.s32.totalorder %s24, %s40
    %p42 = scmp.eq.s32.totalorder %s16, 0
    %p43 = por %p41, %p42
    %s45 = sadd.s32 %s44, 1
    %p48 = scmp.eq.s32.totalorder %s10, 1
    %p49 = scmp.ne.s32.totalorder %s44, %s46
    %p50 = scmp.eq.s32.totalorder %s10, 0
    %p51 = por %p49, %p50
    %p52 = scmp.ne.s32.totalorder %s44, %s46
    %p53 = scmp.eq.s32.totalorder %s15, 1
    %p54 = por %p52, %p53
    %p55 = scmp.ne.s32.totalorder %s46, %s47
    %p56 = scmp.eq.s32.totalorder %s15, 0
    %p57 = por %p55, %p56
    %p58 = scmp.ne.s32.totalorder %s46, %s47
    %p59 = scmp.eq.s32.totalorder %s16, 1
    %p60 = por %p58, %p59
    %p62 = scmp.ne.s32.totalorder %s47, %s61
    %p63 = scmp.eq.s32.totalorder %s16, 0
    %p64 = por %p62, %p63
    %s66 = sadd.s32 %s65, 1
    %p69 = scmp.eq.s32.totalorder %s10, 1
    %p70 = scmp.ne.s32.totalorder %s65, %s67
    %p71 = scmp.eq.s32.totalorder %s10, 0
    %p72 = por %p70, %p71
    %p73 = scmp.ne.s32.totalorder %s65, %s67
    %p74 = scmp.eq.s32.totalorder %s15, 1
    %p75 = por %p73, %p74
    %p76 = scmp.ne.s32.totalorder %s67, %s68
    %p77 = scmp.eq.s32.totalorder %s15, 0
    %p78 = por %p76, %p77
    %p79 = scmp.ne.s32.totalorder %s67, %s68
    %p80 = scmp.eq.s32.totalorder %s16, 1
    %p81 = por %p79, %p80
    %p83 = scmp.ne.s32.totalorder %s68, %s82
    %p84 = scmp.eq.s32.totalorder %s16, 0
    %p85 = por %p83, %p84
    %s86 = ssub.s32 %s10, %s17
    %p87 = scmp.eq.s32.totalorder %s86, 0
    %s89 = sadd.s32 %s88, 1
    %s90 = scalar_select %p87, %s88, %s89
    %p93 = pneg %p87
    %p94 = scmp.eq.s32.totalorder %s10, 1
    %p95 = por %p93, %p94
    %p96 = scmp.ne.s32.totalorder %s88, %s91
    %p97 = scmp.eq.s32.totalorder %s10, 0
    %p98 = por %p96, %p97
    %p99 = scmp.ne.s32.totalorder %s88, %s91
    %p100 = scmp.eq.s32.totalorder %s15, 1
    %p101 = por %p99, %p100
    %p102 = scmp.ne.s32.totalorder %s91, %s92
    %p103 = scmp.eq.s32.totalorder %s15, 0
    %p104 = por %p102, %p103
    %p105 = scmp.ne.s32.totalorder %s91, %s92
    %p106 = scmp.eq.s32.totalorder %s16, 1
    %p107 = por %p105, %p106
    %p109 = scmp.ne.s32.totalorder %s92, %s108
    %p110 = scmp.eq.s32.totalorder %s16, 0
    %p111 = por %p109, %p110
    %s112 = ssub.s32 %s10, %s17
    %p113 = scmp.eq.s32.totalorder %s112, 0
    %s115 = sadd.s32 %s114, 1
    %s116 = scalar_select %p113, %s114, %s115
    %p119 = pneg %p113
    %p120 = scmp.eq.s32.totalorder %s10, 1
    %p121 = por %p119, %p120
    %p122 = scmp.ne.s32.totalorder %s114, %s117
    %p123 = scmp.eq.s32.totalorder %s10, 0
    %p124 = por %p122, %p123
    %p125 = scmp.ne.s32.totalorder %s114, %s117
    %p126 = scmp.eq.s32.totalorder %s15, 1
    %p127 = por %p125, %p126
    %p128 = scmp.ne.s32.totalorder %s117, %s118
    %p129 = scmp.eq.s32.totalorder %s15, 0
    %p130 = por %p128, %p129
    %p131 = scmp.ne.s32.totalorder %s117, %s118
    %p132 = scmp.eq.s32.totalorder %s16, 1
    %p133 = por %p131, %p132
    %p135 = scmp.ne.s32.totalorder %s118, %s134
    %p136 = scmp.eq.s32.totalorder %s16, 0
    %p137 = por %p135, %p136
    %p138 = scmp.le.s32.totalorder 1, %s10
    %p139 = scmp.lt.s32.totalorder %s10, 3
    %p140 = pnand %p138, %p139
    %p141 = pneg %p140
    // Predicated region
    $region9: #{special_module_forward.3} parent=5 // pred_check
      _
    $region10: #{special_module_forward.3} parent=5 // pred_check_branch
      %143 = sbr.rel (%p140) target = $region12
    $region11: #{special_module_forward.3} parent=5 // pred_region
      %s144 = ssub.s32 %s10, 1
      // Predicated region
      $region13: #{special_module_forward.3} parent=11 // pred_check
        %p145 = pneg %p57
      $region14: #{special_module_forward.3} parent=11 // pred_check_branch
        %147 = sbr.rel (%p145) target = $region16
      $region15: #{special_module_forward.3} parent=11 // pred_region
        _
      $region16: #{special_module_forward.3} parent=11 // pred_fallthru
        _
      // Predicated region
      $region17: #{special_module_forward.3} parent=11 // pred_check
        %p148 = pneg %p78
      $region18: #{special_module_forward.3} parent=11 // pred_check_branch
        %150 = sbr.rel (%p148) target = $region20
      $region19: #{special_module_forward.3} parent=11 // pred_region
        _
      $region20: #{special_module_forward.3} parent=11 // pred_fallthru
        _
    $region12: #{special_module_forward.3} parent=5 // pred_fallthru
      _
    %p151 = scmp.lt.s32.totalorder %s10, 2
    // Predicated region
    $region21: #{special_module_forward.3} parent=5 // pred_check
      %p152 = pneg %p151
    $region22: #{special_module_forward.3} parent=5 // pred_check_branch
      %154 = sbr.rel (%p152) target = $region24
    $region23: #{special_module_forward.3} parent=5 // pred_region
      // Predicated region
      $region25: #{special_module_forward.3} parent=23 // pred_check
        %p155 = pneg %p30
      $region26: #{special_module_forward.3} parent=23 // pred_check_branch
        %157 = sbr.rel (%p155) target = $region28
      $region27: #{special_module_forward.3} parent=23 // pred_region
        %s158 = smul.u32 8, %s10
        %p159 = scmp.lt.s32.totalorder %s158, 15
        %s160 = scalar_select %p159, %s158, 15
        %s161 = smul.addr %s160, 4
        %s162 = scalar_lea.vmem %s0, %s161
        %s163 = smul.u32 8, %s10
      $region28: #{special_module_forward.3} parent=23 // pred_fallthru
        _
      // Predicated region
      $region29: #{special_module_forward.3} parent=23 // pred_check
        %p164 = pneg %p98
      $region30: #{special_module_forward.3} parent=23 // pred_check_branch
        %166 = sbr.rel (%p164) target = $region32
      $region31: #{special_module_forward.3} parent=23 // pred_region
        %s167 = smul.u32 8, %s10
        %p168 = scmp.lt.s32.totalorder %s167, 15
        %s169 = scalar_select %p168, %s167, 15
        %s170 = smul.addr %s169, 4
        %s171 = scalar_lea.vmem %s3, %s170
        %s172 = smul.u32 8, %s10
      $region32: #{special_module_forward.3} parent=23 // pred_fallthru
        _
    $region24: #{special_module_forward.3} parent=5 // pred_fallthru
      _
    %p173 = scmp.le.s32.totalorder 1, %s10
    %p174 = scmp.lt.s32.totalorder %s10, 3
    %p175 = pnand %p173, %p174
    %p176 = pneg %p175
    // Predicated region
    $region33: #{special_module_forward.3} parent=5 // pred_check
      _
    $region34: #{special_module_forward.3} parent=5 // pred_check_branch
      %178 = sbr.rel (%p175) target = $region36
    $region35: #{special_module_forward.3} parent=5 // pred_region
      %s179 = ssub.s32 %s10, 1
      %s180 = smul.u32 8, %s15
      %p181 = scmp.lt.s32.totalorder %s180, 15
      %s182 = scalar_select %p181, %s180, 15
      %s183 = smul.addr %s182, 4
      %s184 = scalar_lea.vmem %s0, %s183
      %p185 = pneg %p36
      %p186 = pneg %p33
      %p187 = pneg %p57
      %p188 = pneg %p54
      %p189 = pneg %p78
      %p190 = pneg %p75
      %s191 = smul.u32 8, %s15
      %p192 = scmp.lt.s32.totalorder %s191, 15
      %s193 = scalar_select %p192, %s191, 15
      %s194 = smul.addr %s193, 4
      %s195 = scalar_lea.vmem %s3, %s194
      %p196 = pneg %p104
      %p197 = pneg %p101
      %p198 = pneg %p130
      %p199 = pneg %p127
      %s200 = smul.u32 8, %s15
      %p201 = scmp.lt.s32.totalorder %s200, 15
      %s202 = scalar_select %p201, %s200, 15
      %s203 = smul.addr %s202, 8
      %s204 = scalar_lea.vmem %s4, %s203
      %s205 = smul.u32 8, %s15
      %p206 = scmp.lt.s32.totalorder %s205, 15
      %s207 = scalar_select %p206, %s205, 15
      %s208 = smul.addr %s207, 4
      %s209 = scalar_lea.vmem %s0, %s208
      %s210 = smul.u32 8, %s15
      %s211 = smul.u32 8, %s15
      %p212 = scmp.lt.s32.totalorder %s211, 15
      %s213 = scalar_select %p212, %s211, 15
      %s214 = smul.addr %s213, 4
      %s215 = scalar_lea.vmem %s3, %s214
      %s216 = smul.u32 8, %s15
      %s217 = smul.u32 8, %s15
      %p218 = scmp.lt.s32.totalorder %s217, 15
      %s219 = scalar_select %p218, %s217, 15
      %s220 = smul.addr %s219, 8
      %s221 = scalar_lea.vmem %s4, %s220
      %s222 = smul.u32 8, %s15
      %v224 = vld [vmem:[%s209] sm:$0xf]
      %v225 = vld [vmem:[%s209 + $0x4] sm:$0xf]
      %v226 = vld [vmem:[%s209 + $0x8] sm:$0xf]
      %v227 = vld [vmem:[%s209 + $0xc] sm:$0xf]
      %v228 = vld [vmem:[%s209 + $0x10] sm:$0xf]
      %v229 = vld [vmem:[%s209 + $0x14] sm:$0xf]
      %v230 = vld [vmem:[%s209 + $0x18] sm:$0xf]
      %v231 = vld [vmem:[%s209 + $0x1c] sm:$0xf]
      %v232 = vld [vmem:[%s1] sm:$0xf]
      %v233 = vld [vmem:[%s1 + $0x4] sm:$0xf]
      %v234 = vld [vmem:[%s1 + $0x8] sm:$0xf]
      %v235 = vld [vmem:[%s1 + $0xc] sm:$0xf]
      %v236 = vld [vmem:[%s1 + $0x10] sm:$0xf]
      %v237 = vld [vmem:[%s1 + $0x14] sm:$0xf]
      %v238 = vld [vmem:[%s1 + $0x18] sm:$0xf]
      %v239 = vld [vmem:[%s1 + $0x1c] sm:$0xf]
      %v240 = vld [vmem:[%s1 + $0x20] sm:$0xf]
      %v241 = vld [vmem:[%s2] sm:$0x1]
      %v243 = vperm.slane %v241, 0
      %v253 = vunpack.c.l.b16 %v224
      %v254 = vunpack.c.l.b16 %v225
      %v255 = vunpack.c.l.b16 %v226
      %v256 = vunpack.c.l.b16 %v227
      %v257 = vunpack.c.l.b16 %v228
      %v258 = vunpack.c.l.b16 %v229
      %v259 = vunpack.c.l.b16 %v230
      %v260 = vunpack.c.l.b16 %v231
      %v261 = vpack.c.b16 %v254, %v253
      %v262 = vpack.c.b16 %v256, %v255
      %v263 = vpack.c.b16 %v258, %v257
      %v264 = vpack.c.b16 %v260, %v259
      %v274 = vunpack.c.l.b16 %v232
      %v275 = vunpack.c.l.b16 %v233
      %v276 = vunpack.c.l.b16 %v234
      %v277 = vunpack.c.l.b16 %v235
      %v278 = vunpack.c.l.b16 %v236
      %v279 = vunpack.c.l.b16 %v237
      %v280 = vunpack.c.l.b16 %v238
      %v281 = vunpack.c.l.b16 %v239
      %v282 = vunpack.c.l.b16 %v240
      %v283 = vpack.c.b16 %v275, %v274
      %v284 = vpack.c.b16 %v277, %v276
      %v285 = vpack.c.b16 %v279, %v278
      %v286 = vpack.c.b16 %v281, %v280
      %v287 = vpack.c.b16 %v282, %v282
      %vm292 = vcmask 588800
      %v294 = vsel %vm292, %v261, 0
      %v297 = vsel %vm292, %v262, 0
      %v300 = vsel %vm292, %v263, 0
      %v303 = vsel %vm292, %v264, 0
      %vm305 = vcmask 1043456
      %v307 = vsel %vm305, %v287, 0
      %309 = vmatpush.bf16.msra.mxu0 0
      %310 = vmatpush.bf16.msra.mxu0 0
      %311 = vmatpush.bf16.msra.mxu0 0
      %312 = vmatpush.bf16.msra.mxu0 %v307
      %313 = vmatpush.bf16.msra.mxu0 %v286
      %314 = vmatpush.bf16.msra.mxu0 %v285
      %315 = vmatpush.bf16.msra.mxu0 %v284
      %316 = vmatpush.bf16.msra.mxu0 %v283
      %317 = vmatmul.bf16.gmra.mxu0 %v294
      %v318 = vpop.f32.mrf.mxu0
      %v319 = vadd.f32 %v243, %v318
      %v320 = vpop.f32.mrf.mxu0
      %v321 = vadd.f32 %v243, %v320
      %322 = vmatmul.bf16.gmra.mxu0 %v297
      %v323 = vpop.f32.mrf.mxu0
      %v324 = vadd.f32 %v243, %v323
      %v325 = vpop.f32.mrf.mxu0
      %v326 = vadd.f32 %v243, %v325
      %327 = vmatmul.bf16.gmra.mxu0 %v300
      %v328 = vpop.f32.mrf.mxu0
      %v329 = vadd.f32 %v243, %v328
      %v330 = vpop.f32.mrf.mxu0
      %v331 = vadd.f32 %v243, %v330
      %332 = vmatmul.bf16.gmra.mxu0 %v303
      %v333 = vpop.f32.mrf.mxu0
      %v334 = vadd.f32 %v243, %v333
      %v335 = vpop.f32.mrf.mxu0
      %v336 = vadd.f32 %v243, %v335
      %337 = vdwg.mxu0
      %v338 = vld [vmem:[%s215] sm:$0xf]
      %v339 = vld [vmem:[%s215 + $0x4] sm:$0xf]
      %v340 = vld [vmem:[%s215 + $0x8] sm:$0xf]
      %v341 = vld [vmem:[%s215 + $0xc] sm:$0xf]
      %v342 = vld [vmem:[%s215 + $0x10] sm:$0xf]
      %v343 = vld [vmem:[%s215 + $0x14] sm:$0xf]
      %v344 = vld [vmem:[%s215 + $0x18] sm:$0xf]
      %v345 = vld [vmem:[%s215 + $0x1c] sm:$0xf]
      %v346 = vunpack.c.l.bf16 %v338
      %v347 = vunpack.c.l.bf16 %v339
      %v348 = vunpack.c.l.bf16 %v340
      %v349 = vunpack.c.l.bf16 %v341
      %v350 = vunpack.c.l.bf16 %v342
      %v351 = vunpack.c.l.bf16 %v343
      %v352 = vunpack.c.l.bf16 %v344
      %v353 = vunpack.c.l.bf16 %v345
      %v354 = vadd.f32 %v319, %v346
      %v355 = vadd.f32 %v321, %v347
      %v356 = vadd.f32 %v324, %v348
      %v357 = vadd.f32 %v326, %v349
      %v358 = vadd.f32 %v329, %v350
      %v359 = vadd.f32 %v331, %v351
      %v360 = vadd.f32 %v334, %v352
      %v361 = vadd.f32 %v336, %v353
      %v362 = vmax.f32 %v354, 0.0
      %v363 = vmax.f32 %v355, 0.0
      %v364 = vmax.f32 %v356, 0.0
      %v365 = vmax.f32 %v357, 0.0
      %v366 = vmax.f32 %v358, 0.0
      %v367 = vmax.f32 %v359, 0.0
      %v368 = vmax.f32 %v360, 0.0
      %v369 = vmax.f32 %v361, 0.0
      %370 = vst [vmem:[%s221] sm:$0xff] %v362
      %371 = vst [vmem:[%s221 + $0x8] sm:$0xff] %v363
      %372 = vst [vmem:[%s221 + $0x10] sm:$0xff] %v364
      %373 = vst [vmem:[%s221 + $0x18] sm:$0xff] %v365
      %374 = vst [vmem:[%s221 + $0x20] sm:$0xff] %v366
      %375 = vst [vmem:[%s221 + $0x28] sm:$0xff] %v367
      %376 = vst [vmem:[%s221 + $0x30] sm:$0xff] %v368
      %377 = vst [vmem:[%s221 + $0x38] sm:$0xff] %v369
      %s378 = smul.u32 8, %s15
      %p379 = scmp.lt.s32.totalorder %s378, 15
      %s380 = scalar_select %p379, %s378, 15
      %s381 = smul.addr %s380, 8
      %s382 = scalar_lea.vmem %s4, %s381
      // Predicated region
      $region37: #{special_module_forward.3} parent=35 // pred_check
        %p383 = pneg %p127
      $region38: #{special_module_forward.3} parent=35 // pred_check_branch
        %385 = sbr.rel (%p383) target = $region40
      $region39: #{special_module_forward.3} parent=35 // pred_region
        %s386 = smul.u32 8, %s15
      $region40: #{special_module_forward.3} parent=35 // pred_fallthru
        _
    $region36: #{special_module_forward.3} parent=5 // pred_fallthru
      _
    %p387 = scmp.le.s32.totalorder 2, %s10
    // Predicated region
    $region41: #{special_module_forward.3} parent=5 // pred_check
      %p388 = pneg %p387
    $region42: #{special_module_forward.3} parent=5 // pred_check_branch
      %390 = sbr.rel (%p388) target = $region44
    $region43: #{special_module_forward.3} parent=5 // pred_region
      %s391 = ssub.s32 %s10, 2
      // Predicated region
      $region45: #{special_module_forward.3} parent=43 // pred_check
        %p392 = pneg %p133
      $region46: #{special_module_forward.3} parent=43 // pred_check_branch
        %394 = sbr.rel (%p392) target = $region48
      $region47: #{special_module_forward.3} parent=43 // pred_region
        %s395 = smul.u32 8, %s16
        %p396 = scmp.lt.s32.totalorder %s395, 15
        %s397 = scalar_select %p396, %s395, 15
        %s398 = smul.addr %s397, 8
        %s399 = scalar_lea.vmem %s4, %s398
      $region48: #{special_module_forward.3} parent=43 // pred_fallthru
        _
    $region44: #{special_module_forward.3} parent=5 // pred_fallthru
      _
  $region6: #{special_module_forward.3} parent=0 // loop_footer
    %s14 = sadd.s32 1, %s10
  $region7: #{special_module_forward.3} parent=0 // loop_footer_branch
    %9 = sbr.rel target = $region3
  $region8: #{special_module_forward.3} parent=0 // loop_exit
    _

</llo_original>
